<compile_context>
chip_gen: v5e
topology: v5e:2x2
jax: 0.10.0
libtpu: 0.0.40
codegen_flags: <defaults>
</compile_context>

<pallas_src>
import math

import jax
import jax.numpy as jnp
from jax.experimental import pallas as pl
from jax.experimental.pallas import tpu as pltpu  # noqa: F401

# ---- model config (small, consistent with the module's forward) ----
D_MODEL = 32
NHEAD = 4
DIM_FF = 64
SEQ = 8
BATCH = 2
HEAD_DIM = D_MODEL // NHEAD
EPS = 1e-5  # nn.LayerNorm default


def _layernorm(x, gamma, beta):
    mean = jnp.mean(x, axis=-1, keepdims=True)
    var = jnp.mean((x - mean) ** 2, axis=-1, keepdims=True)
    return (x - mean) * jax.lax.rsqrt(var + EPS) * gamma + beta


def encoder_layer_kernel(sp_ref, mask_ref, wbig_ref, w2_ref, pv_ref, o_ref):
    """Whole problem in one invocation.

    sp_ref  : (2*SN, E)  rows [0:SN] = src (s-major), rows [SN:2SN] = pos
    mask_ref: (SN, SN)   additive mask (0 allowed / -1e9 for cross-batch or padded key)
    wbig_ref: (E, 6E)    [Wq^T*scale | Wk^T | Wv^T | Wo^T | W1^T]
    w2_ref  : (F, E)     W2^T
    pv_ref  : (8, 128)   packed 1-D params (biases + layernorm gamma/beta)
    """
    SN = mask_ref.shape[0]
    E = o_ref.shape[1]
    F = w2_ref.shape[0]
    H = NHEAD
    D = E // H

    sp = sp_ref[...]
    src = sp[0:SN, :]                          # (SN, E)  sublane-aligned slice
    xp = src + sp[SN:2 * SN, :]                # q = k input = src + pos

    # -------- unpack the single (8,128) parameter tile (static slices) --------
    pv = pv_ref[...]
    b_qk = pv[0:1, 0:2 * E]                    # [bq*scale | bk]
    b_v = pv[0:1, 2 * E:3 * E]
    b_o = pv[1:2, 0:E]
    b_1 = pv[2:3, 0:F]
    b_2 = pv[3:4, 0:E]
    g1, be1 = pv[4:5, 0:E], pv[5:6, 0:E]
    g2, be2 = pv[6:7, 0:E], pv[7:8, 0:E]

    # -------- unpack the single weight slab (static slices, done once) --------
    wbig = wbig_ref[...]
    w_qk = wbig[:, 0:2 * E]                    # (E, 2E)
    w_v = wbig[:, 2 * E:3 * E]                 # (E, E)
    w_o = wbig[:, 3 * E:4 * E]                 # (E, E) = out_proj.weight^T
    w_1 = wbig[:, 4 * E:4 * E + F]             # (E, F)

    # -------- fused Q/K projection (scale pre-folded) + V projection --------
    qk = jnp.dot(xp, w_qk, preferred_element_type=jnp.float32) + b_qk   # (SN, 2E)
    v = jnp.dot(src, w_v, preferred_element_type=jnp.float32) + b_v     # (SN, E)

    mask = mask_ref[...]                        # (SN, SN) additive

    # -------- attention over the full (SN x SN) logits, heads statically unrolled ----
    # Cross-batch key pairs carry -1e9 -> exp underflows to exactly 0, so this equals the
    # per-batch softmax.  Per-head output projection is accumulated directly
    # (sum_h ctx_h @ Wo_h^T == concat_h(ctx_h) @ Wo^T), avoiding any concatenate.
    acc = jnp.zeros((SN, E), jnp.float32)
    for h in range(H):
        q_h = qk[:, h * D:(h + 1) * D]                      # (SN, D), already scaled
        k_h = qk[:, E + h * D:E + (h + 1) * D]              # (SN, D)
        v_h = v[:, h * D:(h + 1) * D]                       # (SN, D)
        logits = jnp.einsum('qd,kd->qk', q_h, k_h,
                            preferred_element_type=jnp.float32) + mask   # (SN, SN)
        m = jnp.max(logits, axis=-1, keepdims=True)
        p = jnp.exp(logits - m)
        attn = p / jnp.sum(p, axis=-1, keepdims=True)       # exact div (tolerance safety)
        ctx = jnp.dot(attn, v_h, preferred_element_type=jnp.float32)     # (SN, D)
        acc = acc + jnp.dot(ctx, w_o[h * D:(h + 1) * D, :],
                            preferred_element_type=jnp.float32)
    attn_out = acc + b_o

    # -------- residual + norm1 --------
    x = _layernorm(src + attn_out, g1, be1)

    # -------- feed-forward: linear2(relu(linear1(x))); dropout == identity --------
    h1 = jnp.maximum(
        jnp.dot(x, w_1, preferred_element_type=jnp.float32) + b_1, 0.0)
    ff = jnp.dot(h1, w2_ref[...], preferred_element_type=jnp.float32) + b_2

    # -------- residual + norm2 --------
    o_ref[...] = _layernorm(x + ff, g2, be2)


# ------------------------- one-time parameter preprocessing -------------------------
def prepare_params(params):
    """Hoisted out of the per-call path (feedback): transposes, packing, scale folding."""
    (in_w, in_b, out_w, out_b, l1_w, l1_b, l2_w, l2_b, g1, b1, g2, b2) = params
    E, F, H = D_MODEL, DIM_FF, NHEAD
    D = E // H
    scale = 1.0 / math.sqrt(D)

    in_w = in_w.astype(jnp.float32)
    w_q_T = in_w[0:E, :].T * scale                   # scale folded into Wq
    w_k_T = in_w[E:2 * E, :].T
    w_v_T = in_w[2 * E:3 * E, :].T
    w_o_T = out_w.astype(jnp.float32).T              # (E, E)
    w_1_T = l1_w.astype(jnp.float32).T               # (E, F)
    w_2_T = l2_w.astype(jnp.float32).T               # (F, E)

    # one (E, 6E) weight slab: [Wq*s | Wk | Wv | Wo | W1]  -> single DMA in the kernel
    w_big = jnp.concatenate([w_q_T, w_k_T, w_v_T, w_o_T, w_1_T], axis=1)

    in_b = in_b.astype(jnp.float32)
    pv = jnp.zeros((8, 128), jnp.float32)
    pv = pv.at[0, 0:E].set(in_b[0:E] * scale)        # bq * scale (scale folded)
    pv = pv.at[0, E:2 * E].set(in_b[E:2 * E])        # bk
    pv = pv.at[0, 2 * E:3 * E].set(in_b[2 * E:3 * E])  # bv
    pv = pv.at[1, 0:E].set(out_b.astype(jnp.float32))
    pv = pv.at[2, 0:F].set(l1_b.astype(jnp.float32))
    pv = pv.at[3, 0:E].set(l2_b.astype(jnp.float32))
    pv = pv.at[4, 0:E].set(g1.astype(jnp.float32))
    pv = pv.at[5, 0:E].set(b1.astype(jnp.float32))
    pv = pv.at[6, 0:E].set(g2.astype(jnp.float32))
    pv = pv.at[7, 0:E].set(b2.astype(jnp.float32))

    # static batch-block mask for the fused (SN x SN) attention (s-major: row i = s*N + n)
    n_of_row = jnp.tile(jnp.arange(BATCH, dtype=jnp.int32), SEQ)     # (SN,)
    same_batch = n_of_row[:, None] == n_of_row[None, :]              # (SN, SN) bool

    return (w_big, w_2_T, pv, same_batch)


# ------------------------- per-call forward (thin wrapper) -------------------------
def transformer_encoder_layer(src, pos, key_padding_mask, prepared):
    """src, pos: (S, N, E) float32; key_padding_mask: (N, S) bool (True = pad)."""
    S, N, E = src.shape
    SN = S * N
    w_big, w_2_T, pv, same_batch = prepared

    # s-major flatten: reshape-only views, NO (S,N,E)<->(N,S,E) transposes.
    x_sp = jnp.concatenate(
        [src.reshape(SN, E).astype(jnp.float32),
         pos.reshape(SN, E).astype(jnp.float32)], axis=0)            # (2*SN, E)

    # Combined additive mask: -1e9 where the key belongs to a different batch element OR is
    # padded.  Note: -1e9 instead of -inf; a fully-padded key row yields a uniform softmax
    # instead of PyTorch's NaN — only differs in that degenerate case.
    kpm_flat = jnp.transpose(key_padding_mask).reshape(SN)           # key j = s*N + n
    allowed = same_batch & jnp.logical_not(kpm_flat)[None, :]
    add_mask = jnp.where(allowed, 0.0, -1e9).astype(jnp.float32)     # (SN, SN)

    # Single gridless invocation: every operand is one whole-array VMEM block, which is the
    # right structure for this tiny, launch/DMA-latency-bound problem (5 operands total).
    out_flat = pl.pallas_call(
        encoder_layer_kernel,
        out_shape=jax.ShapeDtypeStruct((SN, E), jnp.float32),
    )(x_sp, add_mask, w_big, w_2_T, pv)

    return out_flat.reshape(S, N, E)                                 # free view, no transpose


# ------------------------- pure-JAX reference -------------------------
def _ref_one(src, pos, add_mask_row, params):
    (in_w, in_b, out_w, out_b, l1_w, l1_b, l2_w, l2_b, g1, b1, g2, b2) = params
    E = D_MODEL
    qk_in = src + pos
    q = qk_in @ in_w[0:E].T + in_b[0:E]
    k = qk_in @ in_w[E:2 * E].T + in_b[E:2 * E]
    v = src @ in_w[2 * E:3 * E].T + in_b[2 * E:3 * E]
    scale = 1.0 / math.sqrt(HEAD_DIM)
    outs = []
    for h in range(NHEAD):
        sl = slice(h * HEAD_DIM, (h + 1) * HEAD_DIM)
        logits = (q[:, sl] * scale) @ k[:, sl].T + add_mask_row[None, :]
        attn = jax.nn.softmax(logits, axis=-1)
        outs.append(attn @ v[:, sl])
    attn_out = jnp.concatenate(outs, axis=-1) @ out_w.T + out_b
    x = _layernorm(src + attn_out, g1, b1)
    ff = jnp.maximum(x @ l1_w.T + l1_b, 0.0) @ l2_w.T + l2_b
    return _layernorm(x + ff, g2, b2)


def ref_forward(src, pos, kpm, params):
    src_b = jnp.transpose(src, (1, 0, 2))
    pos_b = jnp.transpose(pos, (1, 0, 2))
    add_mask = jnp.where(kpm, -1e9, 0.0).astype(jnp.float32)
    out = jax.vmap(_ref_one, in_axes=(0, 0, 0, None))(src_b, pos_b, add_mask, params)
    return jnp.transpose(out, (1, 0, 2))


# ------------------------- deterministic init -------------------------
def make_params(key):
    E, F = D_MODEL, DIM_FF
    ks = jax.random.split(key, 8)
    sc = 0.05
    in_w = jax.random.normal(ks[0], (3 * E, E), jnp.float32) * sc
    in_b = jax.random.normal(ks[1], (3 * E,), jnp.float32) * sc
    out_w = jax.random.normal(ks[2], (E, E), jnp.float32) * sc
    out_b = jax.random.normal(ks[3], (E,), jnp.float32) * sc
    l1_w = jax.random.normal(ks[4], (F, E), jnp.float32) * sc
    l1_b = jax.random.normal(ks[5], (F,), jnp.float32) * sc
    l2_w = jax.random.normal(ks[6], (E, F), jnp.float32) * sc
    l2_b = jax.random.normal(ks[7], (E,), jnp.float32) * sc
    g1 = jnp.ones((E,), jnp.float32)
    b1 = jnp.zeros((E,), jnp.float32)
    g2 = jnp.ones((E,), jnp.float32)
    b2 = jnp.zeros((E,), jnp.float32)
    return (in_w, in_b, out_w, out_b, l1_w, l1_b, l2_w, l2_b, g1, b1, g2, b2)


if __name__ == "__main__":
    key = jax.random.PRNGKey(0)
    k_src, k_pos, k_par = jax.random.split(key, 3)
    src = jax.random.normal(k_src, (SEQ, BATCH, D_MODEL), jnp.float32)
    pos = jax.random.normal(k_pos, (SEQ, BATCH, D_MODEL), jnp.float32)
    key_padding_mask = jnp.zeros((BATCH, SEQ), dtype=bool)  # no padding
    params = make_params(k_par)

    prepared = prepare_params(params)          # one-time preprocessing (hoisted per feedback)
    fwd = jax.jit(transformer_encoder_layer)   # fuses the few remaining per-call wrapper ops

    out = fwd(src, pos, key_padding_mask, prepared)
    out = jax.block_until_ready(out)

    ref = ref_forward(src, pos, key_padding_mask, params)
    assert out.shape == (SEQ, BATCH, D_MODEL)
    assert jnp.allclose(out, ref, atol=1e-4, rtol=1e-4), "mismatch vs JAX reference"

    print("KERNEL_OK")
</pallas_src>

<mosaic_0001>
module attributes {stable_mosaic.version = 11 : i64} {
  func.func @encoder_layer_kernel(%arg0: memref<32x32xf32, #tpu.memory_space<vmem>>, %arg1: memref<16x16xf32, #tpu.memory_space<vmem>>, %arg2: memref<32x192xf32, #tpu.memory_space<vmem>>, %arg3: memref<64x32xf32, #tpu.memory_space<vmem>>, %arg4: memref<8x128xf32, #tpu.memory_space<vmem>>, %arg5: memref<16x32xf32, #tpu.memory_space<vmem>>) attributes {dimension_semantics = [], scalar_prefetch = 0 : i64, scratch_operands = 0 : i64, tpu.core_type = #tpu.core_type<tc>} {
    %c0 = arith.constant 0 : index
    %c0_0 = arith.constant 0 : index
    %0 = vector.load %arg0[%c0, %c0_0] : memref<32x32xf32, #tpu.memory_space<vmem>>, vector<32x32xf32>
    %1 = vector.extract_strided_slice %0 {offsets = [0, 0], sizes = [16, 32], strides = [1, 1]} : vector<32x32xf32> to vector<16x32xf32>
    %2 = vector.extract_strided_slice %0 {offsets = [16, 0], sizes = [16, 32], strides = [1, 1]} : vector<32x32xf32> to vector<16x32xf32>
    %3 = arith.addf %1, %2 : vector<16x32xf32>
    %c0_1 = arith.constant 0 : index
    %c0_2 = arith.constant 0 : index
    %4 = vector.load %arg4[%c0_1, %c0_2] : memref<8x128xf32, #tpu.memory_space<vmem>>, vector<8x128xf32>
    %5 = vector.extract_strided_slice %4 {offsets = [0, 0], sizes = [1, 64], strides = [1, 1]} : vector<8x128xf32> to vector<1x64xf32>
    %6 = vector.extract_strided_slice %4 {offsets = [0, 64], sizes = [1, 32], strides = [1, 1]} : vector<8x128xf32> to vector<1x32xf32>
    %7 = vector.extract_strided_slice %4 {offsets = [1, 0], sizes = [1, 32], strides = [1, 1]} : vector<8x128xf32> to vector<1x32xf32>
    %8 = vector.extract_strided_slice %4 {offsets = [2, 0], sizes = [1, 64], strides = [1, 1]} : vector<8x128xf32> to vector<1x64xf32>
    %9 = vector.extract_strided_slice %4 {offsets = [3, 0], sizes = [1, 32], strides = [1, 1]} : vector<8x128xf32> to vector<1x32xf32>
    %10 = vector.extract_strided_slice %4 {offsets = [4, 0], sizes = [1, 32], strides = [1, 1]} : vector<8x128xf32> to vector<1x32xf32>
    %11 = vector.extract_strided_slice %4 {offsets = [5, 0], sizes = [1, 32], strides = [1, 1]} : vector<8x128xf32> to vector<1x32xf32>
    %12 = vector.extract_strided_slice %4 {offsets = [6, 0], sizes = [1, 32], strides = [1, 1]} : vector<8x128xf32> to vector<1x32xf32>
    %13 = vector.extract_strided_slice %4 {offsets = [7, 0], sizes = [1, 32], strides = [1, 1]} : vector<8x128xf32> to vector<1x32xf32>
    %c0_3 = arith.constant 0 : index
    %c0_4 = arith.constant 0 : index
    %14 = vector.load %arg2[%c0_3, %c0_4] : memref<32x192xf32, #tpu.memory_space<vmem>>, vector<32x192xf32>
    %15 = vector.extract_strided_slice %14 {offsets = [0, 0], sizes = [32, 64], strides = [1, 1]} : vector<32x192xf32> to vector<32x64xf32>
    %16 = vector.extract_strided_slice %14 {offsets = [0, 64], sizes = [32, 32], strides = [1, 1]} : vector<32x192xf32> to vector<32x32xf32>
    %17 = vector.extract_strided_slice %14 {offsets = [0, 96], sizes = [32, 32], strides = [1, 1]} : vector<32x192xf32> to vector<32x32xf32>
    %18 = vector.extract_strided_slice %14 {offsets = [0, 128], sizes = [32, 64], strides = [1, 1]} : vector<32x192xf32> to vector<32x64xf32>
    %cst = arith.constant dense<0.000000e+00> : vector<16x64xf32>
    %19 = tpu.matmul %3, %15, %cst {dimension_numbers = #tpu.dot_dimension_numbers<[1], [0], [0], [1], [0, 0, 1, 1], [], []>} : vector<16x32xf32>, vector<32x64xf32>, vector<16x64xf32> -> vector<16x64xf32>
    %20 = vector.broadcast %5 : vector<1x64xf32> to vector<16x64xf32>
    %21 = arith.addf %19, %20 : vector<16x64xf32>
    %cst_5 = arith.constant dense<0.000000e+00> : vector<16x32xf32>
    %22 = tpu.matmul %1, %16, %cst_5 {dimension_numbers = #tpu.dot_dimension_numbers<[1], [0], [0], [1], [0, 0, 1, 1], [], []>} : vector<16x32xf32>, vector<32x32xf32>, vector<16x32xf32> -> vector<16x32xf32>
    %23 = vector.broadcast %6 : vector<1x32xf32> to vector<16x32xf32>
    %24 = arith.addf %22, %23 : vector<16x32xf32>
    %c0_6 = arith.constant 0 : index
    %c0_7 = arith.constant 0 : index
    %25 = vector.load %arg1[%c0_6, %c0_7] : memref<16x16xf32, #tpu.memory_space<vmem>>, vector<16x16xf32>
    %cst_8 = arith.constant 0.000000e+00 : f32
    %26 = vector.broadcast %cst_8 : f32 to vector<16x32xf32>
    %27 = vector.extract_strided_slice %21 {offsets = [0, 0], sizes = [16, 8], strides = [1, 1]} : vector<16x64xf32> to vector<16x8xf32>
    %28 = vector.extract_strided_slice %21 {offsets = [0, 32], sizes = [16, 8], strides = [1, 1]} : vector<16x64xf32> to vector<16x8xf32>
    %29 = vector.extract_strided_slice %24 {offsets = [0, 0], sizes = [16, 8], strides = [1, 1]} : vector<16x32xf32> to vector<16x8xf32>
    "tpu.trace_start"() <{level = 10 : i32, message = "qd,kd->qk"}> : () -> ()
    %cst_9 = arith.constant dense<0.000000e+00> : vector<16x16xf32>
    %30 = tpu.matmul %27, %28, %cst_9 {dimension_numbers = #tpu.dot_dimension_numbers<[1], [1], [0], [0], [0, 0, 1, 0], [], []>} : vector<16x8xf32>, vector<16x8xf32>, vector<16x16xf32> -> vector<16x16xf32>
    "tpu.trace_stop"() : () -> ()
    %31 = arith.addf %30, %25 : vector<16x16xf32>
    %cst_10 = arith.constant dense<0xFF800000> : vector<16xf32>
    %32 = vector.multi_reduction <maximumf>, %31, %cst_10 [1] : vector<16x16xf32> to vector<16xf32>
    %33 = vector.shape_cast %32 : vector<16xf32> to vector<16x1xf32>
    %34 = vector.broadcast %33 : vector<16x1xf32> to vector<16x16xf32>
    %35 = arith.subf %31, %34 : vector<16x16xf32>
    %36 = math.exp %35 : vector<16x16xf32>
    %cst_11 = arith.constant dense<0.000000e+00> : vector<16xf32>
    %37 = vector.multi_reduction <add>, %36, %cst_11 [1] : vector<16x16xf32> to vector<16xf32>
    %38 = vector.shape_cast %37 : vector<16xf32> to vector<16x1xf32>
    %39 = vector.broadcast %38 : vector<16x1xf32> to vector<16x16xf32>
    %40 = arith.divf %36, %39 : vector<16x16xf32>
    %cst_12 = arith.constant dense<0.000000e+00> : vector<16x8xf32>
    %41 = tpu.matmul %40, %29, %cst_12 {dimension_numbers = #tpu.dot_dimension_numbers<[1], [0], [0], [1], [0, 0, 1, 1], [], []>} : vector<16x16xf32>, vector<16x8xf32>, vector<16x8xf32> -> vector<16x8xf32>
    %42 = vector.extract_strided_slice %17 {offsets = [0, 0], sizes = [8, 32], strides = [1, 1]} : vector<32x32xf32> to vector<8x32xf32>
    %cst_13 = arith.constant dense<0.000000e+00> : vector<16x32xf32>
    %43 = tpu.matmul %41, %42, %cst_13 {dimension_numbers = #tpu.dot_dimension_numbers<[1], [0], [0], [1], [0, 0, 1, 1], [], []>} : vector<16x8xf32>, vector<8x32xf32>, vector<16x32xf32> -> vector<16x32xf32>
    %44 = arith.addf %26, %43 : vector<16x32xf32>
    %45 = vector.extract_strided_slice %21 {offsets = [0, 8], sizes = [16, 8], strides = [1, 1]} : vector<16x64xf32> to vector<16x8xf32>
    %46 = vector.extract_strided_slice %21 {offsets = [0, 40], sizes = [16, 8], strides = [1, 1]} : vector<16x64xf32> to vector<16x8xf32>
    %47 = vector.extract_strided_slice %24 {offsets = [0, 8], sizes = [16, 8], strides = [1, 1]} : vector<16x32xf32> to vector<16x8xf32>
    "tpu.trace_start"() <{level = 10 : i32, message = "qd,kd->qk"}> : () -> ()
    %cst_14 = arith.constant dense<0.000000e+00> : vector<16x16xf32>
    %48 = tpu.matmul %45, %46, %cst_14 {dimension_numbers = #tpu.dot_dimension_numbers<[1], [1], [0], [0], [0, 0, 1, 0], [], []>} : vector<16x8xf32>, vector<16x8xf32>, vector<16x16xf32> -> vector<16x16xf32>
    "tpu.trace_stop"() : () -> ()
    %49 = arith.addf %48, %25 : vector<16x16xf32>
    %cst_15 = arith.constant dense<0xFF800000> : vector<16xf32>
    %50 = vector.multi_reduction <maximumf>, %49, %cst_15 [1] : vector<16x16xf32> to vector<16xf32>
    %51 = vector.shape_cast %50 : vector<16xf32> to vector<16x1xf32>
    %52 = vector.broadcast %51 : vector<16x1xf32> to vector<16x16xf32>
    %53 = arith.subf %49, %52 : vector<16x16xf32>
    %54 = math.exp %53 : vector<16x16xf32>
    %cst_16 = arith.constant dense<0.000000e+00> : vector<16xf32>
    %55 = vector.multi_reduction <add>, %54, %cst_16 [1] : vector<16x16xf32> to vector<16xf32>
    %56 = vector.shape_cast %55 : vector<16xf32> to vector<16x1xf32>
    %57 = vector.broadcast %56 : vector<16x1xf32> to vector<16x16xf32>
    %58 = arith.divf %54, %57 : vector<16x16xf32>
    %cst_17 = arith.constant dense<0.000000e+00> : vector<16x8xf32>
    %59 = tpu.matmul %58, %47, %cst_17 {dimension_numbers = #tpu.dot_dimension_numbers<[1], [0], [0], [1], [0, 0, 1, 1], [], []>} : vector<16x16xf32>, vector<16x8xf32>, vector<16x8xf32> -> vector<16x8xf32>
    %60 = vector.extract_strided_slice %17 {offsets = [8, 0], sizes = [8, 32], strides = [1, 1]} : vector<32x32xf32> to vector<8x32xf32>
    %cst_18 = arith.constant dense<0.000000e+00> : vector<16x32xf32>
    %61 = tpu.matmul %59, %60, %cst_18 {dimension_numbers = #tpu.dot_dimension_numbers<[1], [0], [0], [1], [0, 0, 1, 1], [], []>} : vector<16x8xf32>, vector<8x32xf32>, vector<16x32xf32> -> vector<16x32xf32>
    %62 = arith.addf %44, %61 : vector<16x32xf32>
    %63 = vector.extract_strided_slice %21 {offsets = [0, 16], sizes = [16, 8], strides = [1, 1]} : vector<16x64xf32> to vector<16x8xf32>
    %64 = vector.extract_strided_slice %21 {offsets = [0, 48], sizes = [16, 8], strides = [1, 1]} : vector<16x64xf32> to vector<16x8xf32>
    %65 = vector.extract_strided_slice %24 {offsets = [0, 16], sizes = [16, 8], strides = [1, 1]} : vector<16x32xf32> to vector<16x8xf32>
    "tpu.trace_start"() <{level = 10 : i32, message = "qd,kd->qk"}> : () -> ()
    %cst_19 = arith.constant dense<0.000000e+00> : vector<16x16xf32>
    %66 = tpu.matmul %63, %64, %cst_19 {dimension_numbers = #tpu.dot_dimension_numbers<[1], [1], [0], [0], [0, 0, 1, 0], [], []>} : vector<16x8xf32>, vector<16x8xf32>, vector<16x16xf32> -> vector<16x16xf32>
    "tpu.trace_stop"() : () -> ()
    %67 = arith.addf %66, %25 : vector<16x16xf32>
    %cst_20 = arith.constant dense<0xFF800000> : vector<16xf32>
    %68 = vector.multi_reduction <maximumf>, %67, %cst_20 [1] : vector<16x16xf32> to vector<16xf32>
    %69 = vector.shape_cast %68 : vector<16xf32> to vector<16x1xf32>
    %70 = vector.broadcast %69 : vector<16x1xf32> to vector<16x16xf32>
    %71 = arith.subf %67, %70 : vector<16x16xf32>
    %72 = math.exp %71 : vector<16x16xf32>
    %cst_21 = arith.constant dense<0.000000e+00> : vector<16xf32>
    %73 = vector.multi_reduction <add>, %72, %cst_21 [1] : vector<16x16xf32> to vector<16xf32>
    %74 = vector.shape_cast %73 : vector<16xf32> to vector<16x1xf32>
    %75 = vector.broadcast %74 : vector<16x1xf32> to vector<16x16xf32>
    %76 = arith.divf %72, %75 : vector<16x16xf32>
    %cst_22 = arith.constant dense<0.000000e+00> : vector<16x8xf32>
    %77 = tpu.matmul %76, %65, %cst_22 {dimension_numbers = #tpu.dot_dimension_numbers<[1], [0], [0], [1], [0, 0, 1, 1], [], []>} : vector<16x16xf32>, vector<16x8xf32>, vector<16x8xf32> -> vector<16x8xf32>
    %78 = vector.extract_strided_slice %17 {offsets = [16, 0], sizes = [8, 32], strides = [1, 1]} : vector<32x32xf32> to vector<8x32xf32>
    %cst_23 = arith.constant dense<0.000000e+00> : vector<16x32xf32>
    %79 = tpu.matmul %77, %78, %cst_23 {dimension_numbers = #tpu.dot_dimension_numbers<[1], [0], [0], [1], [0, 0, 1, 1], [], []>} : vector<16x8xf32>, vector<8x32xf32>, vector<16x32xf32> -> vector<16x32xf32>
    %80 = arith.addf %62, %79 : vector<16x32xf32>
    %81 = vector.extract_strided_slice %21 {offsets = [0, 24], sizes = [16, 8], strides = [1, 1]} : vector<16x64xf32> to vector<16x8xf32>
    %82 = vector.extract_strided_slice %21 {offsets = [0, 56], sizes = [16, 8], strides = [1, 1]} : vector<16x64xf32> to vector<16x8xf32>
    %83 = vector.extract_strided_slice %24 {offsets = [0, 24], sizes = [16, 8], strides = [1, 1]} : vector<16x32xf32> to vector<16x8xf32>
    "tpu.trace_start"() <{level = 10 : i32, message = "qd,kd->qk"}> : () -> ()
    %cst_24 = arith.constant dense<0.000000e+00> : vector<16x16xf32>
    %84 = tpu.matmul %81, %82, %cst_24 {dimension_numbers = #tpu.dot_dimension_numbers<[1], [1], [0], [0], [0, 0, 1, 0], [], []>} : vector<16x8xf32>, vector<16x8xf32>, vector<16x16xf32> -> vector<16x16xf32>
    "tpu.trace_stop"() : () -> ()
    %85 = arith.addf %84, %25 : vector<16x16xf32>
    %cst_25 = arith.constant dense<0xFF800000> : vector<16xf32>
    %86 = vector.multi_reduction <maximumf>, %85, %cst_25 [1] : vector<16x16xf32> to vector<16xf32>
    %87 = vector.shape_cast %86 : vector<16xf32> to vector<16x1xf32>
    %88 = vector.broadcast %87 : vector<16x1xf32> to vector<16x16xf32>
    %89 = arith.subf %85, %88 : vector<16x16xf32>
    %90 = math.exp %89 : vector<16x16xf32>
    %cst_26 = arith.constant dense<0.000000e+00> : vector<16xf32>
    %91 = vector.multi_reduction <add>, %90, %cst_26 [1] : vector<16x16xf32> to vector<16xf32>
    %92 = vector.shape_cast %91 : vector<16xf32> to vector<16x1xf32>
    %93 = vector.broadcast %92 : vector<16x1xf32> to vector<16x16xf32>
    %94 = arith.divf %90, %93 : vector<16x16xf32>
    %cst_27 = arith.constant dense<0.000000e+00> : vector<16x8xf32>
    %95 = tpu.matmul %94, %83, %cst_27 {dimension_numbers = #tpu.dot_dimension_numbers<[1], [0], [0], [1], [0, 0, 1, 1], [], []>} : vector<16x16xf32>, vector<16x8xf32>, vector<16x8xf32> -> vector<16x8xf32>
    %96 = vector.extract_strided_slice %17 {offsets = [24, 0], sizes = [8, 32], strides = [1, 1]} : vector<32x32xf32> to vector<8x32xf32>
    %cst_28 = arith.constant dense<0.000000e+00> : vector<16x32xf32>
    %97 = tpu.matmul %95, %96, %cst_28 {dimension_numbers = #tpu.dot_dimension_numbers<[1], [0], [0], [1], [0, 0, 1, 1], [], []>} : vector<16x8xf32>, vector<8x32xf32>, vector<16x32xf32> -> vector<16x32xf32>
    %98 = arith.addf %80, %97 : vector<16x32xf32>
    %99 = vector.broadcast %7 : vector<1x32xf32> to vector<16x32xf32>
    %100 = arith.addf %98, %99 : vector<16x32xf32>
    %101 = arith.addf %1, %100 : vector<16x32xf32>
    %cst_29 = arith.constant dense<0.000000e+00> : vector<16xf32>
    %102 = vector.multi_reduction <add>, %101, %cst_29 [1] : vector<16x32xf32> to vector<16xf32>
    %103 = vector.shape_cast %102 : vector<16xf32> to vector<16x1xf32>
    %cst_30 = arith.constant 3.200000e+01 : f32
    %104 = vector.broadcast %cst_30 : f32 to vector<16x1xf32>
    %105 = arith.divf %103, %104 : vector<16x1xf32>
    %106 = vector.broadcast %105 : vector<16x1xf32> to vector<16x32xf32>
    %107 = arith.subf %101, %106 : vector<16x32xf32>
    %108 = arith.mulf %107, %107 : vector<16x32xf32>
    %cst_31 = arith.constant dense<0.000000e+00> : vector<16xf32>
    %109 = vector.multi_reduction <add>, %108, %cst_31 [1] : vector<16x32xf32> to vector<16xf32>
    %110 = vector.shape_cast %109 : vector<16xf32> to vector<16x1xf32>
    %cst_32 = arith.constant 3.200000e+01 : f32
    %111 = vector.broadcast %cst_32 : f32 to vector<16x1xf32>
    %112 = arith.divf %110, %111 : vector<16x1xf32>
    %113 = vector.broadcast %105 : vector<16x1xf32> to vector<16x32xf32>
    %114 = arith.subf %101, %113 : vector<16x32xf32>
    %cst_33 = arith.constant 9.99999974E-6 : f32
    %115 = vector.broadcast %cst_33 : f32 to vector<16x1xf32>
    %116 = arith.addf %112, %115 : vector<16x1xf32>
    %117 = math.rsqrt %116 : vector<16x1xf32>
    %118 = vector.broadcast %117 : vector<16x1xf32> to vector<16x32xf32>
    %119 = arith.mulf %114, %118 : vector<16x32xf32>
    %120 = vector.broadcast %10 : vector<1x32xf32> to vector<16x32xf32>
    %121 = arith.mulf %119, %120 : vector<16x32xf32>
    %122 = vector.broadcast %11 : vector<1x32xf32> to vector<16x32xf32>
    %123 = arith.addf %121, %122 : vector<16x32xf32>
    %cst_34 = arith.constant dense<0.000000e+00> : vector<16x64xf32>
    %124 = tpu.matmul %123, %18, %cst_34 {dimension_numbers = #tpu.dot_dimension_numbers<[1], [0], [0], [1], [0, 0, 1, 1], [], []>} : vector<16x32xf32>, vector<32x64xf32>, vector<16x64xf32> -> vector<16x64xf32>
    %125 = vector.broadcast %8 : vector<1x64xf32> to vector<16x64xf32>
    %126 = arith.addf %124, %125 : vector<16x64xf32>
    %cst_35 = arith.constant 0.000000e+00 : f32
    %127 = vector.broadcast %cst_35 : f32 to vector<16x64xf32>
    %128 = arith.maximumf %126, %127 : vector<16x64xf32>
    %c0_36 = arith.constant 0 : index
    %c0_37 = arith.constant 0 : index
    %129 = vector.load %arg3[%c0_36, %c0_37] : memref<64x32xf32, #tpu.memory_space<vmem>>, vector<64x32xf32>
    %cst_38 = arith.constant dense<0.000000e+00> : vector<16x32xf32>
    %130 = tpu.matmul %128, %129, %cst_38 {dimension_numbers = #tpu.dot_dimension_numbers<[1], [0], [0], [1], [0, 0, 1, 1], [], []>} : vector<16x64xf32>, vector<64x32xf32>, vector<16x32xf32> -> vector<16x32xf32>
    %131 = vector.broadcast %9 : vector<1x32xf32> to vector<16x32xf32>
    %132 = arith.addf %130, %131 : vector<16x32xf32>
    %133 = arith.addf %123, %132 : vector<16x32xf32>
    %cst_39 = arith.constant dense<0.000000e+00> : vector<16xf32>
    %134 = vector.multi_reduction <add>, %133, %cst_39 [1] : vector<16x32xf32> to vector<16xf32>
    %135 = vector.shape_cast %134 : vector<16xf32> to vector<16x1xf32>
    %cst_40 = arith.constant 3.200000e+01 : f32
    %136 = vector.broadcast %cst_40 : f32 to vector<16x1xf32>
    %137 = arith.divf %135, %136 : vector<16x1xf32>
    %138 = vector.broadcast %137 : vector<16x1xf32> to vector<16x32xf32>
    %139 = arith.subf %133, %138 : vector<16x32xf32>
    %140 = arith.mulf %139, %139 : vector<16x32xf32>
    %cst_41 = arith.constant dense<0.000000e+00> : vector<16xf32>
    %141 = vector.multi_reduction <add>, %140, %cst_41 [1] : vector<16x32xf32> to vector<16xf32>
    %142 = vector.shape_cast %141 : vector<16xf32> to vector<16x1xf32>
    %cst_42 = arith.constant 3.200000e+01 : f32
    %143 = vector.broadcast %cst_42 : f32 to vector<16x1xf32>
    %144 = arith.divf %142, %143 : vector<16x1xf32>
    %145 = vector.broadcast %137 : vector<16x1xf32> to vector<16x32xf32>
    %146 = arith.subf %133, %145 : vector<16x32xf32>
    %cst_43 = arith.constant 9.99999974E-6 : f32
    %147 = vector.broadcast %cst_43 : f32 to vector<16x1xf32>
    %148 = arith.addf %144, %147 : vector<16x1xf32>
    %149 = math.rsqrt %148 : vector<16x1xf32>
    %150 = vector.broadcast %149 : vector<16x1xf32> to vector<16x32xf32>
    %151 = arith.mulf %146, %150 : vector<16x32xf32>
    %152 = vector.broadcast %12 : vector<1x32xf32> to vector<16x32xf32>
    %153 = arith.mulf %151, %152 : vector<16x32xf32>
    %154 = vector.broadcast %13 : vector<1x32xf32> to vector<16x32xf32>
    %155 = arith.addf %153, %154 : vector<16x32xf32>
    %c0_44 = arith.constant 0 : index
    %c0_45 = arith.constant 0 : index
    %156 = vector.load %arg5[%c0_44, %c0_45] : memref<16x32xf32, #tpu.memory_space<vmem>>, vector<16x32xf32>
    tpu.vector_store %arg5[%c0_44, %c0_45], %155 {strides = array<i32>} : memref<16x32xf32, #tpu.memory_space<vmem>>, vector<16x32xf32>,
    return
  }
}

</mosaic_0001>

<llo_original>
// kernel: transformer_encoder_layer.1
$region0: #{transformer_encoder_layer.1}
  #allocation0 [shape = 'u32[]', space=smem, size = 0x4, offset = 0x4, fixed_abs, tag = 'smem constant byte address 0x4 - core index']
  #allocation1 [shape = 'u32[72,128]{1,0:T(1,128)}', space=vmem, size = 0x9000, scoped, tag = 'internal scratch']
  %s0 = inlined_call_operand.vmem [shape: f32[32,32], index: 0, kind: input, shape index: {}]
  %s1 = inlined_call_operand.vmem [shape: f32[16,16], index: 1, kind: input, shape index: {}]
  %s2 = inlined_call_operand.vmem [shape: f32[32,192], index: 2, kind: input, shape index: {}]
  %s3 = inlined_call_operand.vmem [shape: f32[64,32], index: 3, kind: input, shape index: {}]
  %s4 = inlined_call_operand.vmem [shape: f32[8,128], index: 4, kind: input, shape index: {}]
  %s5 = inlined_call_operand.hbm [shape: f32[16,32], index: 5, kind: output, shape index: {}]
  %s6 = sld [smem:[#allocation0]]
  $region30: #{transformer_encoder_layer.1} parent=0
    _
  %s8 = ssub.s32 1, %s6
  %s9 = scalar_select 0, %s8, %s6
  $region1: #{transformer_encoder_layer.1} parent=0
    #allocation2 [shape = 'u8[8192]{0}', space=vmem, size = 0x2000, scoped, tag = 'output window, operand 0, single buffered']
    #allocation3 [shape = 's32[1]{0}', space=sflag, size = 0x4, scoped, tag = 'scoped memory for transformer_encoder_layer.1']
    %10 = vsyncpa [#allocation3], 0
    // Predicated region
    $region2: #{transformer_encoder_layer.1} parent=1 // pred_check
      _
    $region3: #{transformer_encoder_layer.1} parent=1 // pred_check_branch
      %12 = sbr.rel (0) target = $region5
    $region4: #{transformer_encoder_layer.1} parent=1 // pred_region
      _
    $region5: #{transformer_encoder_layer.1} parent=1 // pred_fallthru
      _
    // Predicated region
    $region6: #{transformer_encoder_layer.1} parent=1 // pred_check
      _
    $region7: #{transformer_encoder_layer.1} parent=1 // pred_check_branch
      %14 = sbr.rel (0) target = $region9
    $region8: #{transformer_encoder_layer.1} parent=1 // pred_region
      _
    $region9: #{transformer_encoder_layer.1} parent=1 // pred_fallthru
      _
    // Predicated region
    $region10: #{transformer_encoder_layer.1} parent=1 // pred_check
      _
    $region11: #{transformer_encoder_layer.1} parent=1 // pred_check_branch
      %16 = sbr.rel (0) target = $region13
    $region12: #{transformer_encoder_layer.1} parent=1 // pred_region
      _
    $region13: #{transformer_encoder_layer.1} parent=1 // pred_fallthru
      _
    // Predicated region
    $region14: #{transformer_encoder_layer.1} parent=1 // pred_check
      _
    $region15: #{transformer_encoder_layer.1} parent=1 // pred_check_branch
      %18 = sbr.rel (0) target = $region17
    $region16: #{transformer_encoder_layer.1} parent=1 // pred_region
      _
    $region17: #{transformer_encoder_layer.1} parent=1 // pred_fallthru
      _
    // Predicated region
    $region18: #{transformer_encoder_layer.1} parent=1 // pred_check
      _
    $region19: #{transformer_encoder_layer.1} parent=1 // pred_check_branch
      %20 = sbr.rel (0) target = $region21
    $region20: #{transformer_encoder_layer.1} parent=1 // pred_region
      _
    $region21: #{transformer_encoder_layer.1} parent=1 // pred_fallthru
      _
    %v21 = vld [vmem:[%s0] sm:$0xff]
    %v22 = vld [vmem:[%s0 + $0x8] sm:$0xff]
    %v23 = vld [vmem:[%s0 + $0x10] sm:$0xff]
    %v24 = vld [vmem:[%s0 + $0x18] sm:$0xff]
    %v25 = vadd.f32 %v21, %v23
    %v26 = vadd.f32 %v22, %v24
    %v27 = vld [vmem:[%s4] sm:$0xff]
    %v28 = vld [vmem:[%s2] sm:$0xff]
    %v29 = vld [vmem:[%s2 + $0x8] sm:$0xff]
    %v30 = vld [vmem:[%s2 + $0x10] sm:$0xff]
    %v31 = vld [vmem:[%s2 + $0x18] sm:$0xff]
    %v32 = vld [vmem:[%s2 + $0x20] sm:$0xff]
    %v33 = vld [vmem:[%s2 + $0x28] sm:$0xff]
    %v34 = vld [vmem:[%s2 + $0x30] sm:$0xff]
    %v35 = vld [vmem:[%s2 + $0x38] sm:$0xff]
    %v36 = vperm.slane %v27, 0
    %vm37 = vcmask 261120
    %v39 = vsel %vm37, %v25, 0
    %v42 = vsel %vm37, %v26, 0
    %44 = vmatpush.msra.mxu0 0.0
    %45 = vmatpush.msra.mxu0 0.0
    %46 = vmatpush.msra.mxu0 0.0
    %47 = vmatpush.msra.mxu0 0.0
    %48 = vmatpush.msra.mxu0 0.0
    %49 = vmatpush.msra.mxu0 0.0
    %50 = vmatpush.msra.mxu0 0.0
    %51 = vmatpush.msra.mxu0 0.0
    %52 = vmatpush.msra.mxu0 0.0
    %53 = vmatpush.msra.mxu0 0.0
    %54 = vmatpush.msra.mxu0 0.0
    %55 = vmatpush.msra.mxu0 0.0
    %56 = vmatpush.msra.mxu0 %v34
    %57 = vmatpush.msra.mxu0 %v32
    %58 = vmatpush.msra.mxu0 %v30
    %59 = vmatpush.msra.mxu0 %v28
    %60 = vmatmul.f32.gmra.mxu0 %v39
    %v61 = vpop.f32.mrf.mxu0
    %v62 = vadd.f32 %v36, %v61
    %63 = vmatmul.f32.gmra.mxu0 %v42
    %v64 = vpop.f32.mrf.mxu0
    %v65 = vadd.f32 %v36, %v64
    %66 = vdwg.mxu0
    %71 = vrot.lane.b32.xlu0 %v28, 64
    %v72 = vpop.permute.xlu0 %71
    %73 = vrot.lane.b32.xlu0 %v30, 64
    %v74 = vpop.permute.xlu0 %73
    %75 = vrot.lane.b32.xlu0 %v32, 64
    %v76 = vpop.permute.xlu0 %75
    %77 = vrot.lane.b32.xlu0 %v34, 64
    %v78 = vpop.permute.xlu0 %77
    %84 = vrot.lane.b32.xlu0 %v36, 64
    %v85 = vpop.permute.xlu0 %84
    %v88 = vsel %vm37, %v21, 0
    %v91 = vsel %vm37, %v22, 0
    %93 = vmatpush.msra.mxu0 0.0
    %94 = vmatpush.msra.mxu0 0.0
    %95 = vmatpush.msra.mxu0 0.0
    %96 = vmatpush.msra.mxu0 0.0
    %97 = vmatpush.msra.mxu0 0.0
    %98 = vmatpush.msra.mxu0 0.0
    %99 = vmatpush.msra.mxu0 0.0
    %100 = vmatpush.msra.mxu0 0.0
    %101 = vmatpush.msra.mxu0 0.0
    %102 = vmatpush.msra.mxu0 0.0
    %103 = vmatpush.msra.mxu0 0.0
    %104 = vmatpush.msra.mxu0 0.0
    %105 = vmatpush.msra.mxu0 %v78
    %106 = vmatpush.msra.mxu0 %v76
    %107 = vmatpush.msra.mxu0 %v74
    %108 = vmatpush.msra.mxu0 %v72
    %109 = vmatmul.f32.gmra.mxu0 %v88
    %v110 = vpop.f32.mrf.mxu0
    %v111 = vadd.f32 %v85, %v110
    %112 = vmatmul.f32.gmra.mxu0 %v91
    %v113 = vpop.f32.mrf.mxu0
    %v114 = vadd.f32 %v85, %v113
    %115 = vdwg.mxu0
    %v116 = vld [vmem:[%s1] sm:$0xff]
    %v117 = vld [vmem:[%s1 + $0x8] sm:$0xff]
    %120 = vrot.lane.b32.xlu0 %v62, 96
    %v121 = vpop.permute.xlu0 %120
    %122 = vrot.lane.b32.xlu0 %v65, 96
    %v123 = vpop.permute.xlu0 %122
    %vm124 = vcmask 64512
    %v125 = vsel %vm124, %v62, 0
    %v127 = vsel %vm124, %v65, 0
    %v129 = vsel %vm124, %v121, 0
    %v131 = vsel %vm124, %v123, 0
    %133 = vmatpush.xpose.msra.mxu0 0.0
    %134 = vmatpush.xpose.msra.mxu0 0.0
    %135 = vmatpush.xpose.msra.mxu0 0.0
    %136 = vmatpush.xpose.msra.mxu0 0.0
    %137 = vmatpush.xpose.msra.mxu0 0.0
    %138 = vmatpush.xpose.msra.mxu0 0.0
    %139 = vmatpush.xpose.msra.mxu0 0.0
    %140 = vmatpush.xpose.msra.mxu0 0.0
    %141 = vmatpush.xpose.msra.mxu0 0.0
    %142 = vmatpush.xpose.msra.mxu0 0.0
    %143 = vmatpush.xpose.msra.mxu0 0.0
    %144 = vmatpush.xpose.msra.mxu0 0.0
    %145 = vmatpush.xpose.msra.mxu0 0.0
    %146 = vmatpush.xpose.msra.mxu0 0.0
    %147 = vmatpush.xpose.msra.mxu0 %v131
    %148 = vmatpush.xpose.msra.mxu0 %v129
    %149 = vmatmul.f32.gmra.mxu0 %v125
    %v150 = vpop.f32.mrf.mxu0
    %v151 = vadd.f32 %v116, %v150
    %152 = vmatmul.f32.gmra.mxu0 %v127
    %v153 = vpop.f32.mrf.mxu0
    %v154 = vadd.f32 %v117, %v153
    %155 = vdwg.mxu0
    %vm156 = vcmask 130048
    %v157 = vsel %vm156, %v151, -inf
    %158 = vmax.xlane.f32.xlu0 %v157
    %v159 = vpop.xlane.xlu0 %158
    %v160 = vsel %vm156, %v154, -inf
    %161 = vmax.xlane.f32.xlu0 %v160
    %v162 = vpop.xlane.xlu0 %161
    %v163 = vsub.f32 %v151, %v159
    %v164 = vsub.f32 %v154, %v162
    %v165 = vmul.f32 %v163, 1.442695
    %v166 = vpow.pop %v165
    %v167 = vmul.f32 %v164, 1.442695
    %v168 = vpow.pop %v167
    %v169 = vsel %vm156, %v166, 0.0
    %170 = vadd.xlane.f32.xlu0 %v169
    %v171 = vpop.xlane.xlu0 %170
    %v172 = vsel %vm156, %v168, 0.0
    %173 = vadd.xlane.f32.xlu0 %v172
    %v174 = vpop.xlane.xlu0 %173
    %v175 = vrcp.pop %v171
    %v176 = vmul.f32 %v171, %v175
    %v177 = vsub.f32 1.0, %v176
    %v178 = vmul.f32 %v175, %v177
    %v179 = vadd.f32 %v175, %v178
    %vm180 = vweird.f32 %v171
    %vm181 = vweird.f32 %v175
    %vm182 = vmor %vm180, %vm181
    %v183 = vsel %vm182, %v175, %v179
    %v184 = vand.u32 2147483647, %v171
    %vm185 = vcmp.eq.f32.partialorder %v184, 8.507059e+37
    %v186 = vand.u32 %v171, 2147483648
    %v187 = vor.u32 1.1754944e-38, %v186
    %v188 = vsel %vm185, %v187, %v183
    %v189 = vmul.f32 %v166, %v188
    %v190 = vrcp.pop %v174
    %v191 = vmul.f32 %v174, %v190
    %v192 = vsub.f32 1.0, %v191
    %v193 = vmul.f32 %v190, %v192
    %v194 = vadd.f32 %v190, %v193
    %vm195 = vweird.f32 %v174
    %vm196 = vweird.f32 %v190
    %vm197 = vmor %vm195, %vm196
    %v198 = vsel %vm197, %v190, %v194
    %v199 = vand.u32 2147483647, %v174
    %vm200 = vcmp.eq.f32.partialorder %v199, 8.507059e+37
    %v201 = vand.u32 %v174, 2147483648
    %v202 = vor.u32 1.1754944e-38, %v201
    %v203 = vsel %vm200, %v202, %v198
    %v204 = vmul.f32 %v168, %v203
    %v206 = vsel %vm156, %v189, 0
    %v209 = vsel %vm156, %v204, 0
    %211 = vmatpush.msra.mxu0 0.0
    %212 = vmatpush.msra.mxu0 0.0
    %213 = vmatpush.msra.mxu0 0.0
    %214 = vmatpush.msra.mxu0 0.0
    %215 = vmatpush.msra.mxu0 0.0
    %216 = vmatpush.msra.mxu0 0.0
    %217 = vmatpush.msra.mxu0 0.0
    %218 = vmatpush.msra.mxu0 0.0
    %219 = vmatpush.msra.mxu0 0.0
    %220 = vmatpush.msra.mxu0 0.0
    %221 = vmatpush.msra.mxu0 0.0
    %222 = vmatpush.msra.mxu0 0.0
    %223 = vmatpush.msra.mxu0 0.0
    %224 = vmatpush.msra.mxu0 0.0
    %225 = vmatpush.msra.mxu0 %v114
    %226 = vmatpush.msra.mxu0 %v111
    %227 = vmatmul.f32.gmra.mxu0 %v206
    %v228 = vpop.f32.mrf.mxu0
    %v229 = vadd.f32 0.0, %v228
    %230 = vmatmul.f32.gmra.mxu0 %v209
    %v231 = vpop.f32.mrf.mxu0
    %v232 = vadd.f32 0.0, %v231
    %233 = vdwg.mxu0
    %234 = vrot.lane.b32.xlu0 %v62, 120
    %v235 = vpop.permute.xlu0 %234
    %236 = vrot.lane.b32.xlu0 %v65, 120
    %v237 = vpop.permute.xlu0 %236
    %238 = vrot.lane.b32.xlu0 %v62, 88
    %v239 = vpop.permute.xlu0 %238
    %240 = vrot.lane.b32.xlu0 %v65, 88
    %v241 = vpop.permute.xlu0 %240
    %v242 = vsel %vm124, %v235, 0
    %v244 = vsel %vm124, %v237, 0
    %v246 = vsel %vm124, %v239, 0
    %v248 = vsel %vm124, %v241, 0
    %250 = vmatpush.xpose.msra.mxu0 0.0
    %251 = vmatpush.xpose.msra.mxu0 0.0
    %252 = vmatpush.xpose.msra.mxu0 0.0
    %253 = vmatpush.xpose.msra.mxu0 0.0
    %254 = vmatpush.xpose.msra.mxu0 0.0
    %255 = vmatpush.xpose.msra.mxu0 0.0
    %256 = vmatpush.xpose.msra.mxu0 0.0
    %257 = vmatpush.xpose.msra.mxu0 0.0
    %258 = vmatpush.xpose.msra.mxu0 0.0
    %259 = vmatpush.xpose.msra.mxu0 0.0
    %260 = vmatpush.xpose.msra.mxu0 0.0
    %261 = vmatpush.xpose.msra.mxu0 0.0
    %262 = vmatpush.xpose.msra.mxu0 0.0
    %263 = vmatpush.xpose.msra.mxu0 0.0
    %264 = vmatpush.xpose.msra.mxu0 %v248
    %265 = vmatpush.xpose.msra.mxu0 %v246
    %266 = vmatmul.f32.gmra.mxu0 %v242
    %v267 = vpop.f32.mrf.mxu0
    %v268 = vadd.f32 %v116, %v267
    %269 = vmatmul.f32.gmra.mxu0 %v244
    %v270 = vpop.f32.mrf.mxu0
    %v271 = vadd.f32 %v117, %v270
    %272 = vdwg.mxu0
    %v273 = vsel %vm156, %v268, -inf
    %274 = vmax.xlane.f32.xlu0 %v273
    %v275 = vpop.xlane.xlu0 %274
    %v276 = vsel %vm156, %v271, -inf
    %277 = vmax.xlane.f32.xlu0 %v276
    %v278 = vpop.xlane.xlu0 %277
    %v279 = vsub.f32 %v268, %v275
    %v280 = vsub.f32 %v271, %v278
    %v281 = vmul.f32 %v279, 1.442695
    %v282 = vpow.pop %v281
    %v283 = vmul.f32 %v280, 1.442695
    %v284 = vpow.pop %v283
    %v285 = vsel %vm156, %v282, 0.0
    %286 = vadd.xlane.f32.xlu0 %v285
    %v287 = vpop.xlane.xlu0 %286
    %v288 = vsel %vm156, %v284, 0.0
    %289 = vadd.xlane.f32.xlu0 %v288
    %v290 = vpop.xlane.xlu0 %289
    %v291 = vrcp.pop %v287
    %v292 = vmul.f32 %v287, %v291
    %v293 = vsub.f32 1.0, %v292
    %v294 = vmul.f32 %v291, %v293
    %v295 = vadd.f32 %v291, %v294
    %vm296 = vweird.f32 %v287
    %vm297 = vweird.f32 %v291
    %vm298 = vmor %vm296, %vm297
    %v299 = vsel %vm298, %v291, %v295
    %v300 = vand.u32 2147483647, %v287
    %vm301 = vcmp.eq.f32.partialorder %v300, 8.507059e+37
    %v302 = vand.u32 %v287, 2147483648
    %v303 = vor.u32 1.1754944e-38, %v302
    %v304 = vsel %vm301, %v303, %v299
    %v305 = vmul.f32 %v282, %v304
    %v306 = vrcp.pop %v290
    %v307 = vmul.f32 %v290, %v306
    %v308 = vsub.f32 1.0, %v307
    %v309 = vmul.f32 %v306, %v308
    %v310 = vadd.f32 %v306, %v309
    %vm311 = vweird.f32 %v290
    %vm312 = vweird.f32 %v306
    %vm313 = vmor %vm311, %vm312
    %v314 = vsel %vm313, %v306, %v310
    %v315 = vand.u32 2147483647, %v290
    %vm316 = vcmp.eq.f32.partialorder %v315, 8.507059e+37
    %v317 = vand.u32 %v290, 2147483648
    %v318 = vor.u32 1.1754944e-38, %v317
    %v319 = vsel %vm316, %v318, %v314
    %v320 = vmul.f32 %v284, %v319
    %323 = vrot.lane.b32.xlu0 %v111, 120
    %v324 = vpop.permute.xlu0 %323
    %325 = vrot.lane.b32.xlu0 %v114, 120
    %v326 = vpop.permute.xlu0 %325
    %v330 = vsel %vm156, %v305, 0
    %v333 = vsel %vm156, %v320, 0
    %335 = vmatpush.msra.mxu0 0.0
    %336 = vmatpush.msra.mxu0 0.0
    %337 = vmatpush.msra.mxu0 0.0
    %338 = vmatpush.msra.mxu0 0.0
    %339 = vmatpush.msra.mxu0 0.0
    %340 = vmatpush.msra.mxu0 0.0
    %341 = vmatpush.msra.mxu0 0.0
    %342 = vmatpush.msra.mxu0 0.0
    %343 = vmatpush.msra.mxu0 0.0
    %344 = vmatpush.msra.mxu0 0.0
    %345 = vmatpush.msra.mxu0 0.0
    %346 = vmatpush.msra.mxu0 0.0
    %347 = vmatpush.msra.mxu0 0.0
    %348 = vmatpush.msra.mxu0 0.0
    %349 = vmatpush.msra.mxu0 %v326
    %350 = vmatpush.msra.mxu0 %v324
    %351 = vmatmul.f32.gmra.mxu0 %v330
    %v352 = vpop.f32.mrf.mxu0
    %v353 = vadd.f32 0.0, %v352
    %354 = vmatmul.f32.gmra.mxu0 %v333
    %v355 = vpop.f32.mrf.mxu0
    %v356 = vadd.f32 0.0, %v355
    %357 = vdwg.mxu0
    %358 = vrot.lane.b32.xlu0 %v30, 32
    %v359 = vpop.permute.xlu0 %358
    %v362 = vsel %vm124, %v353, 0
    %v365 = vsel %vm124, %v356, 0
    %367 = vmatpush.msra.mxu0 0.0
    %368 = vmatpush.msra.mxu0 0.0
    %369 = vmatpush.msra.mxu0 0.0
    %370 = vmatpush.msra.mxu0 0.0
    %371 = vmatpush.msra.mxu0 0.0
    %372 = vmatpush.msra.mxu0 0.0
    %373 = vmatpush.msra.mxu0 0.0
    %374 = vmatpush.msra.mxu0 0.0
    %375 = vmatpush.msra.mxu0 0.0
    %376 = vmatpush.msra.mxu0 0.0
    %377 = vmatpush.msra.mxu0 0.0
    %378 = vmatpush.msra.mxu0 0.0
    %379 = vmatpush.msra.mxu0 0.0
    %380 = vmatpush.msra.mxu0 0.0
    %381 = vmatpush.msra.mxu0 0.0
    %382 = vmatpush.msra.mxu0 %v359
    %383 = vmatmul.f32.gmra.mxu0 %v362
    %v384 = vpop.f32.mrf.mxu0
    %v385 = vadd.f32 0.0, %v384
    %386 = vmatmul.f32.gmra.mxu0 %v365
    %v387 = vpop.f32.mrf.mxu0
    %v388 = vadd.f32 0.0, %v387
    %389 = vdwg.mxu0
    %390 = vrot.lane.b32.xlu0 %v28, 32
    %v391 = vpop.permute.xlu0 %390
    %v394 = vsel %vm124, %v229, 0
    %v397 = vsel %vm124, %v232, 0
    %399 = vmatpush.msra.mxu0 0.0
    %400 = vmatpush.msra.mxu0 0.0
    %401 = vmatpush.msra.mxu0 0.0
    %402 = vmatpush.msra.mxu0 0.0
    %403 = vmatpush.msra.mxu0 0.0
    %404 = vmatpush.msra.mxu0 0.0
    %405 = vmatpush.msra.mxu0 0.0
    %406 = vmatpush.msra.mxu0 0.0
    %407 = vmatpush.msra.mxu0 0.0
    %408 = vmatpush.msra.mxu0 0.0
    %409 = vmatpush.msra.mxu0 0.0
    %410 = vmatpush.msra.mxu0 0.0
    %411 = vmatpush.msra.mxu0 0.0
    %412 = vmatpush.msra.mxu0 0.0
    %413 = vmatpush.msra.mxu0 0.0
    %414 = vmatpush.msra.mxu0 %v391
    %415 = vmatmul.f32.gmra.mxu0 %v394
    %v416 = vpop.f32.mrf.mxu0
    %v417 = vadd.f32 %v385, %v416
    %418 = vmatmul.f32.gmra.mxu0 %v397
    %v419 = vpop.f32.mrf.mxu0
    %v420 = vadd.f32 %v388, %v419
    %421 = vdwg.mxu0
    %422 = vrot.lane.b32.xlu0 %v62, 112
    %v423 = vpop.permute.xlu0 %422
    %424 = vrot.lane.b32.xlu0 %v65, 112
    %v425 = vpop.permute.xlu0 %424
    %426 = vrot.lane.b32.xlu0 %v62, 80
    %v427 = vpop.permute.xlu0 %426
    %428 = vrot.lane.b32.xlu0 %v65, 80
    %v429 = vpop.permute.xlu0 %428
    %v430 = vsel %vm124, %v423, 0
    %v432 = vsel %vm124, %v425, 0
    %v434 = vsel %vm124, %v427, 0
    %v436 = vsel %vm124, %v429, 0
    %438 = vmatpush.xpose.msra.mxu0 0.0
    %439 = vmatpush.xpose.msra.mxu0 0.0
    %440 = vmatpush.xpose.msra.mxu0 0.0
    %441 = vmatpush.xpose.msra.mxu0 0.0
    %442 = vmatpush.xpose.msra.mxu0 0.0
    %443 = vmatpush.xpose.msra.mxu0 0.0
    %444 = vmatpush.xpose.msra.mxu0 0.0
    %445 = vmatpush.xpose.msra.mxu0 0.0
    %446 = vmatpush.xpose.msra.mxu0 0.0
    %447 = vmatpush.xpose.msra.mxu0 0.0
    %448 = vmatpush.xpose.msra.mxu0 0.0
    %449 = vmatpush.xpose.msra.mxu0 0.0
    %450 = vmatpush.xpose.msra.mxu0 0.0
    %451 = vmatpush.xpose.msra.mxu0 0.0
    %452 = vmatpush.xpose.msra.mxu0 %v436
    %453 = vmatpush.xpose.msra.mxu0 %v434
    %454 = vmatmul.f32.gmra.mxu0 %v430
    %v455 = vpop.f32.mrf.mxu0
    %v456 = vadd.f32 %v116, %v455
    %457 = vmatmul.f32.gmra.mxu0 %v432
    %v458 = vpop.f32.mrf.mxu0
    %v459 = vadd.f32 %v117, %v458
    %460 = vdwg.mxu0
    %v461 = vsel %vm156, %v456, -inf
    %462 = vmax.xlane.f32.xlu0 %v461
    %v463 = vpop.xlane.xlu0 %462
    %v464 = vsel %vm156, %v459, -inf
    %465 = vmax.xlane.f32.xlu0 %v464
    %v466 = vpop.xlane.xlu0 %465
    %v467 = vsub.f32 %v456, %v463
    %v468 = vsub.f32 %v459, %v466
    %v469 = vmul.f32 %v467, 1.442695
    %v470 = vpow.pop %v469
    %v471 = vmul.f32 %v468, 1.442695
    %v472 = vpow.pop %v471
    %v473 = vsel %vm156, %v470, 0.0
    %474 = vadd.xlane.f32.xlu0 %v473
    %v475 = vpop.xlane.xlu0 %474
    %v476 = vsel %vm156, %v472, 0.0
    %477 = vadd.xlane.f32.xlu0 %v476
    %v478 = vpop.xlane.xlu0 %477
    %v479 = vrcp.pop %v475
    %v480 = vmul.f32 %v475, %v479
    %v481 = vsub.f32 1.0, %v480
    %v482 = vmul.f32 %v479, %v481
    %v483 = vadd.f32 %v479, %v482
    %vm484 = vweird.f32 %v475
    %vm485 = vweird.f32 %v479
    %vm486 = vmor %vm484, %vm485
    %v487 = vsel %vm486, %v479, %v483
    %v488 = vand.u32 2147483647, %v475
    %vm489 = vcmp.eq.f32.partialorder %v488, 8.507059e+37
    %v490 = vand.u32 %v475, 2147483648
    %v491 = vor.u32 1.1754944e-38, %v490
    %v492 = vsel %vm489, %v491, %v487
    %v493 = vmul.f32 %v470, %v492
    %v494 = vrcp.pop %v478
    %v495 = vmul.f32 %v478, %v494
    %v496 = vsub.f32 1.0, %v495
    %v497 = vmul.f32 %v494, %v496
    %v498 = vadd.f32 %v494, %v497
    %vm499 = vweird.f32 %v478
    %vm500 = vweird.f32 %v494
    %vm501 = vmor %vm499, %vm500
    %v502 = vsel %vm501, %v494, %v498
    %v503 = vand.u32 2147483647, %v478
    %vm504 = vcmp.eq.f32.partialorder %v503, 8.507059e+37
    %v505 = vand.u32 %v478, 2147483648
    %v506 = vor.u32 1.1754944e-38, %v505
    %v507 = vsel %vm504, %v506, %v502
    %v508 = vmul.f32 %v472, %v507
    %509 = vrot.lane.b32.xlu0 %v111, 112
    %v510 = vpop.permute.xlu0 %509
    %511 = vrot.lane.b32.xlu0 %v114, 112
    %v512 = vpop.permute.xlu0 %511
    %v516 = vsel %vm156, %v493, 0
    %v519 = vsel %vm156, %v508, 0
    %521 = vmatpush.msra.mxu0 0.0
    %522 = vmatpush.msra.mxu0 0.0
    %523 = vmatpush.msra.mxu0 0.0
    %524 = vmatpush.msra.mxu0 0.0
    %525 = vmatpush.msra.mxu0 0.0
    %526 = vmatpush.msra.mxu0 0.0
    %527 = vmatpush.msra.mxu0 0.0
    %528 = vmatpush.msra.mxu0 0.0
    %529 = vmatpush.msra.mxu0 0.0
    %530 = vmatpush.msra.mxu0 0.0
    %531 = vmatpush.msra.mxu0 0.0
    %532 = vmatpush.msra.mxu0 0.0
    %533 = vmatpush.msra.mxu0 0.0
    %534 = vmatpush.msra.mxu0 0.0
    %535 = vmatpush.msra.mxu0 %v512
    %536 = vmatpush.msra.mxu0 %v510
    %537 = vmatmul.f32.gmra.mxu0 %v516
    %v538 = vpop.f32.mrf.mxu0
    %v539 = vadd.f32 0.0, %v538
    %540 = vmatmul.f32.gmra.mxu0 %v519
    %v541 = vpop.f32.mrf.mxu0
    %v542 = vadd.f32 0.0, %v541
    %543 = vdwg.mxu0
    %544 = vrot.lane.b32.xlu0 %v32, 32
    %v545 = vpop.permute.xlu0 %544
    %v548 = vsel %vm124, %v539, 0
    %v551 = vsel %vm124, %v542, 0
    %553 = vmatpush.msra.mxu0 0.0
    %554 = vmatpush.msra.mxu0 0.0
    %555 = vmatpush.msra.mxu0 0.0
    %556 = vmatpush.msra.mxu0 0.0
    %557 = vmatpush.msra.mxu0 0.0
    %558 = vmatpush.msra.mxu0 0.0
    %559 = vmatpush.msra.mxu0 0.0
    %560 = vmatpush.msra.mxu0 0.0
    %561 = vmatpush.msra.mxu0 0.0
    %562 = vmatpush.msra.mxu0 0.0
    %563 = vmatpush.msra.mxu0 0.0
    %564 = vmatpush.msra.mxu0 0.0
    %565 = vmatpush.msra.mxu0 0.0
    %566 = vmatpush.msra.mxu0 0.0
    %567 = vmatpush.msra.mxu0 0.0
    %568 = vmatpush.msra.mxu0 %v545
    %569 = vmatmul.f32.gmra.mxu0 %v548
    %v570 = vpop.f32.mrf.mxu0
    %v571 = vadd.f32 0.0, %v570
    %572 = vmatmul.f32.gmra.mxu0 %v551
    %v573 = vpop.f32.mrf.mxu0
    %v574 = vadd.f32 0.0, %v573
    %575 = vdwg.mxu0
    %v576 = vadd.f32 %v417, %v571
    %v577 = vadd.f32 %v420, %v574
    %578 = vrot.lane.b32.xlu0 %v62, 104
    %v579 = vpop.permute.xlu0 %578
    %580 = vrot.lane.b32.xlu0 %v65, 104
    %v581 = vpop.permute.xlu0 %580
    %582 = vrot.lane.b32.xlu0 %v62, 72
    %v583 = vpop.permute.xlu0 %582
    %584 = vrot.lane.b32.xlu0 %v65, 72
    %v585 = vpop.permute.xlu0 %584
    %v586 = vsel %vm124, %v579, 0
    %v588 = vsel %vm124, %v581, 0
    %v590 = vsel %vm124, %v583, 0
    %v592 = vsel %vm124, %v585, 0
    %594 = vmatpush.xpose.msra.mxu0 0.0
    %595 = vmatpush.xpose.msra.mxu0 0.0
    %596 = vmatpush.xpose.msra.mxu0 0.0
    %597 = vmatpush.xpose.msra.mxu0 0.0
    %598 = vmatpush.xpose.msra.mxu0 0.0
    %599 = vmatpush.xpose.msra.mxu0 0.0
    %600 = vmatpush.xpose.msra.mxu0 0.0
    %601 = vmatpush.xpose.msra.mxu0 0.0
    %602 = vmatpush.xpose.msra.mxu0 0.0
    %603 = vmatpush.xpose.msra.mxu0 0.0
    %604 = vmatpush.xpose.msra.mxu0 0.0
    %605 = vmatpush.xpose.msra.mxu0 0.0
    %606 = vmatpush.xpose.msra.mxu0 0.0
    %607 = vmatpush.xpose.msra.mxu0 0.0
    %608 = vmatpush.xpose.msra.mxu0 %v592
    %609 = vmatpush.xpose.msra.mxu0 %v590
    %610 = vmatmul.f32.gmra.mxu0 %v586
    %v611 = vpop.f32.mrf.mxu0
    %v612 = vadd.f32 %v116, %v611
    %613 = vmatmul.f32.gmra.mxu0 %v588
    %v614 = vpop.f32.mrf.mxu0
    %v615 = vadd.f32 %v117, %v614
    %616 = vdwg.mxu0
    %v617 = vsel %vm156, %v612, -inf
    %618 = vmax.xlane.f32.xlu0 %v617
    %v619 = vpop.xlane.xlu0 %618
    %v620 = vsel %vm156, %v615, -inf
    %621 = vmax.xlane.f32.xlu0 %v620
    %v622 = vpop.xlane.xlu0 %621
    %v623 = vsub.f32 %v612, %v619
    %v624 = vsub.f32 %v615, %v622
    %v625 = vmul.f32 %v623, 1.442695
    %v626 = vpow.pop %v625
    %v627 = vmul.f32 %v624, 1.442695
    %v628 = vpow.pop %v627
    %v629 = vsel %vm156, %v626, 0.0
    %630 = vadd.xlane.f32.xlu0 %v629
    %v631 = vpop.xlane.xlu0 %630
    %v632 = vsel %vm156, %v628, 0.0
    %633 = vadd.xlane.f32.xlu0 %v632
    %v634 = vpop.xlane.xlu0 %633
    %v635 = vrcp.pop %v631
    %v636 = vmul.f32 %v631, %v635
    %v637 = vsub.f32 1.0, %v636
    %v638 = vmul.f32 %v635, %v637
    %v639 = vadd.f32 %v635, %v638
    %vm640 = vweird.f32 %v631
    %vm641 = vweird.f32 %v635
    %vm642 = vmor %vm640, %vm641
    %v643 = vsel %vm642, %v635, %v639
    %v644 = vand.u32 2147483647, %v631
    %vm645 = vcmp.eq.f32.partialorder %v644, 8.507059e+37
    %v646 = vand.u32 %v631, 2147483648
    %v647 = vor.u32 1.1754944e-38, %v646
    %v648 = vsel %vm645, %v647, %v643
    %v649 = vmul.f32 %v626, %v648
    %v650 = vrcp.pop %v634
    %v651 = vmul.f32 %v634, %v650
    %v652 = vsub.f32 1.0, %v651
    %v653 = vmul.f32 %v650, %v652
    %v654 = vadd.f32 %v650, %v653
    %vm655 = vweird.f32 %v634
    %vm656 = vweird.f32 %v650
    %vm657 = vmor %vm655, %vm656
    %v658 = vsel %vm657, %v650, %v654
    %v659 = vand.u32 2147483647, %v634
    %vm660 = vcmp.eq.f32.partialorder %v659, 8.507059e+37
    %v661 = vand.u32 %v634, 2147483648
    %v662 = vor.u32 1.1754944e-38, %v661
    %v663 = vsel %vm660, %v662, %v658
    %v664 = vmul.f32 %v628, %v663
    %665 = vrot.lane.b32.xlu0 %v111, 104
    %v666 = vpop.permute.xlu0 %665
    %667 = vrot.lane.b32.xlu0 %v114, 104
    %v668 = vpop.permute.xlu0 %667
    %v672 = vsel %vm156, %v649, 0
    %v675 = vsel %vm156, %v664, 0
    %677 = vmatpush.msra.mxu0 0.0
    %678 = vmatpush.msra.mxu0 0.0
    %679 = vmatpush.msra.mxu0 0.0
    %680 = vmatpush.msra.mxu0 0.0
    %681 = vmatpush.msra.mxu0 0.0
    %682 = vmatpush.msra.mxu0 0.0
    %683 = vmatpush.msra.mxu0 0.0
    %684 = vmatpush.msra.mxu0 0.0
    %685 = vmatpush.msra.mxu0 0.0
    %686 = vmatpush.msra.mxu0 0.0
    %687 = vmatpush.msra.mxu0 0.0
    %688 = vmatpush.msra.mxu0 0.0
    %689 = vmatpush.msra.mxu0 0.0
    %690 = vmatpush.msra.mxu0 0.0
    %691 = vmatpush.msra.mxu0 %v668
    %692 = vmatpush.msra.mxu0 %v666
    %693 = vmatmul.f32.gmra.mxu0 %v672
    %v694 = vpop.f32.mrf.mxu0
    %v695 = vadd.f32 0.0, %v694
    %696 = vmatmul.f32.gmra.mxu0 %v675
    %v697 = vpop.f32.mrf.mxu0
    %v698 = vadd.f32 0.0, %v697
    %699 = vdwg.mxu0
    %700 = vrot.lane.b32.xlu0 %v34, 32
    %v701 = vpop.permute.xlu0 %700
    %v704 = vsel %vm124, %v695, 0
    %v707 = vsel %vm124, %v698, 0
    %709 = vmatpush.msra.mxu0 0.0
    %710 = vmatpush.msra.mxu0 0.0
    %711 = vmatpush.msra.mxu0 0.0
    %712 = vmatpush.msra.mxu0 0.0
    %713 = vmatpush.msra.mxu0 0.0
    %714 = vmatpush.msra.mxu0 0.0
    %715 = vmatpush.msra.mxu0 0.0
    %716 = vmatpush.msra.mxu0 0.0
    %717 = vmatpush.msra.mxu0 0.0
    %718 = vmatpush.msra.mxu0 0.0
    %719 = vmatpush.msra.mxu0 0.0
    %720 = vmatpush.msra.mxu0 0.0
    %721 = vmatpush.msra.mxu0 0.0
    %722 = vmatpush.msra.mxu0 0.0
    %723 = vmatpush.msra.mxu0 0.0
    %724 = vmatpush.msra.mxu0 %v701
    %725 = vmatmul.f32.gmra.mxu0 %v704
    %v726 = vpop.f32.mrf.mxu0
    %v727 = vadd.f32 0.0, %v726
    %728 = vmatmul.f32.gmra.mxu0 %v707
    %v729 = vpop.f32.mrf.mxu0
    %v730 = vadd.f32 0.0, %v729
    %731 = vdwg.mxu0
    %v732 = vadd.f32 %v576, %v727
    %v733 = vadd.f32 %v577, %v730
    %v734 = vperm.slane %v27, 1
    %v735 = vadd.f32 %v732, %v734
    %v736 = vadd.f32 %v733, %v734
    %v737 = vadd.f32 %v21, %v735
    %v738 = vadd.f32 %v22, %v736
    %v739 = vsel %vm37, %v737, 0.0
    %740 = vadd.xlane.f32.xlu0 %v739
    %v741 = vpop.xlane.xlu0 %740
    %v742 = vsel %vm37, %v738, 0.0
    %743 = vadd.xlane.f32.xlu0 %v742
    %v744 = vpop.xlane.xlu0 %743
    %v745 = vrcp.pop 32.0
    %v746 = vmul.f32 32.0, %v745
    %v747 = vsub.f32 1.0, %v746
    %v748 = vmul.f32 %v745, %v747
    %v749 = vadd.f32 %v745, %v748
    %vm750 = vweird.f32 %v745
    %v751 = vsel %vm750, %v745, %v749
    %v752 = vmul.f32 %v741, %v751
    %v753 = vmul.f32 %v744, %v751
    %v754 = vsub.f32 %v737, %v752
    %v755 = vsub.f32 %v738, %v753
    %v756 = vmul.f32 %v754, %v754
    %v757 = vmul.f32 %v755, %v755
    %v758 = vsel %vm37, %v756, 0.0
    %759 = vadd.xlane.f32.xlu0 %v758
    %v760 = vpop.xlane.xlu0 %759
    %v761 = vsel %vm37, %v757, 0.0
    %762 = vadd.xlane.f32.xlu0 %v761
    %v763 = vpop.xlane.xlu0 %762
    %v764 = vmul.f32 %v760, %v751
    %v765 = vmul.f32 %v763, %v751
    %v766 = vadd.f32 %v764, 1e-05
    %v767 = vadd.f32 %v765, 1e-05
    %v768 = vrsqrt.pop %v766
    %v769 = vmul.f32 %v768, %v766
    %v770 = vmul.f32 %v769, %v768
    %v771 = vmul.f32 0.5, %v770
    %v772 = vsub.f32 1.5, %v771
    %v773 = vmul.f32 %v768, %v772
    %vm774 = vweird.f32 %v766
    %vm775 = vweird.f32 %v768
    %vm776 = vmor %vm774, %vm775
    %v777 = vsel %vm776, %v768, %v773
    %v778 = vrsqrt.pop %v767
    %v779 = vmul.f32 %v778, %v767
    %v780 = vmul.f32 %v779, %v778
    %v781 = vmul.f32 0.5, %v780
    %v782 = vsub.f32 1.5, %v781
    %v783 = vmul.f32 %v778, %v782
    %vm784 = vweird.f32 %v767
    %vm785 = vweird.f32 %v778
    %vm786 = vmor %vm784, %vm785
    %v787 = vsel %vm786, %v778, %v783
    %v788 = vmul.f32 %v754, %v777
    %v789 = vmul.f32 %v755, %v787
    %v790 = vperm.slane %v27, 4
    %v791 = vmul.f32 %v788, %v790
    %v792 = vmul.f32 %v789, %v790
    %v793 = vperm.slane %v27, 5
    %v794 = vadd.f32 %v791, %v793
    %v795 = vadd.f32 %v792, %v793
    %v796 = vperm.slane %v27, 2
    %v798 = vsel %vm37, %v794, 0
    %v801 = vsel %vm37, %v795, 0
    %803 = vmatpush.msra.mxu0 0.0
    %804 = vmatpush.msra.mxu0 0.0
    %805 = vmatpush.msra.mxu0 0.0
    %806 = vmatpush.msra.mxu0 0.0
    %807 = vmatpush.msra.mxu0 0.0
    %808 = vmatpush.msra.mxu0 0.0
    %809 = vmatpush.msra.mxu0 0.0
    %810 = vmatpush.msra.mxu0 0.0
    %811 = vmatpush.msra.mxu0 0.0
    %812 = vmatpush.msra.mxu0 0.0
    %813 = vmatpush.msra.mxu0 0.0
    %814 = vmatpush.msra.mxu0 0.0
    %815 = vmatpush.msra.mxu0 %v35
    %816 = vmatpush.msra.mxu0 %v33
    %817 = vmatpush.msra.mxu0 %v31
    %818 = vmatpush.msra.mxu0 %v29
    %819 = vmatmul.f32.gmra.mxu0 %v798
    %v820 = vpop.f32.mrf.mxu0
    %v821 = vadd.f32 %v796, %v820
    %822 = vmatmul.f32.gmra.mxu0 %v801
    %v823 = vpop.f32.mrf.mxu0
    %v824 = vadd.f32 %v796, %v823
    %825 = vdwg.mxu0
    %v826 = vmax.f32 %v821, 0.0
    %v827 = vmax.f32 %v824, 0.0
    %v828 = vld [vmem:[%s3] sm:$0xff]
    %v829 = vld [vmem:[%s3 + $0x8] sm:$0xff]
    %v830 = vld [vmem:[%s3 + $0x10] sm:$0xff]
    %v831 = vld [vmem:[%s3 + $0x18] sm:$0xff]
    %v832 = vld [vmem:[%s3 + $0x20] sm:$0xff]
    %v833 = vld [vmem:[%s3 + $0x28] sm:$0xff]
    %v834 = vld [vmem:[%s3 + $0x30] sm:$0xff]
    %v835 = vld [vmem:[%s3 + $0x38] sm:$0xff]
    %v836 = vperm.slane %v27, 3
    %vm837 = vcmask 523264
    %v839 = vsel %vm837, %v826, 0
    %v842 = vsel %vm837, %v827, 0
    %844 = vmatpush.msra.mxu0 0.0
    %845 = vmatpush.msra.mxu0 0.0
    %846 = vmatpush.msra.mxu0 0.0
    %847 = vmatpush.msra.mxu0 0.0
    %848 = vmatpush.msra.mxu0 0.0
    %849 = vmatpush.msra.mxu0 0.0
    %850 = vmatpush.msra.mxu0 0.0
    %851 = vmatpush.msra.mxu0 0.0
    %852 = vmatpush.msra.mxu0 %v835
    %853 = vmatpush.msra.mxu0 %v834
    %854 = vmatpush.msra.mxu0 %v833
    %855 = vmatpush.msra.mxu0 %v832
    %856 = vmatpush.msra.mxu0 %v831
    %857 = vmatpush.msra.mxu0 %v830
    %858 = vmatpush.msra.mxu0 %v829
    %859 = vmatpush.msra.mxu0 %v828
    %860 = vmatmul.f32.gmra.mxu0 %v839
    %v861 = vpop.f32.mrf.mxu0
    %v862 = vadd.f32 %v836, %v861
    %863 = vmatmul.f32.gmra.mxu0 %v842
    %v864 = vpop.f32.mrf.mxu0
    %v865 = vadd.f32 %v836, %v864
    %866 = vdwg.mxu0
    %v867 = vadd.f32 %v794, %v862
    %v868 = vadd.f32 %v795, %v865
    %v869 = vsel %vm37, %v867, 0.0
    %870 = vadd.xlane.f32.xlu0 %v869
    %v871 = vpop.xlane.xlu0 %870
    %v872 = vsel %vm37, %v868, 0.0
    %873 = vadd.xlane.f32.xlu0 %v872
    %v874 = vpop.xlane.xlu0 %873
    %v875 = vmul.f32 %v871, %v751
    %v876 = vmul.f32 %v874, %v751
    %v877 = vsub.f32 %v867, %v875
    %v878 = vsub.f32 %v868, %v876
    %v879 = vmul.f32 %v877, %v877
    %v880 = vmul.f32 %v878, %v878
    %v881 = vsel %vm37, %v879, 0.0
    %882 = vadd.xlane.f32.xlu0 %v881
    %v883 = vpop.xlane.xlu0 %882
    %v884 = vsel %vm37, %v880, 0.0
    %885 = vadd.xlane.f32.xlu0 %v884
    %v886 = vpop.xlane.xlu0 %885
    %v887 = vmul.f32 %v883, %v751
    %v888 = vmul.f32 %v886, %v751
    %v889 = vadd.f32 %v887, 1e-05
    %v890 = vadd.f32 %v888, 1e-05
    %v891 = vrsqrt.pop %v889
    %v892 = vmul.f32 %v891, %v889
    %v893 = vmul.f32 %v892, %v891
    %v894 = vmul.f32 0.5, %v893
    %v895 = vsub.f32 1.5, %v894
    %v896 = vmul.f32 %v891, %v895
    %vm897 = vweird.f32 %v889
    %vm898 = vweird.f32 %v891
    %vm899 = vmor %vm897, %vm898
    %v900 = vsel %vm899, %v891, %v896
    %v901 = vrsqrt.pop %v890
    %v902 = vmul.f32 %v901, %v890
    %v903 = vmul.f32 %v902, %v901
    %v904 = vmul.f32 0.5, %v903
    %v905 = vsub.f32 1.5, %v904
    %v906 = vmul.f32 %v901, %v905
    %vm907 = vweird.f32 %v890
    %vm908 = vweird.f32 %v901
    %vm909 = vmor %vm907, %vm908
    %v910 = vsel %vm909, %v901, %v906
    %v911 = vmul.f32 %v877, %v900
    %v912 = vmul.f32 %v878, %v910
    %v913 = vperm.slane %v27, 6
    %v914 = vmul.f32 %v911, %v913
    %v915 = vmul.f32 %v912, %v913
    %v916 = vperm.slane %v27, 7
    %v917 = vadd.f32 %v914, %v916
    %v918 = vadd.f32 %v915, %v916
    %919 = vst.msk [vmem:[#allocation2] sm:$0xff] %vm37, %v917
    %920 = vst.msk [vmem:[#allocation2 + $0x8] sm:$0xff] %vm37, %v918
    // Predicated region
    $region22: #{transformer_encoder_layer.1} parent=1 // pred_check
      _
    $region23: #{transformer_encoder_layer.1} parent=1 // pred_check_branch
      %922 = sbr.rel (0) target = $region25
    $region24: #{transformer_encoder_layer.1} parent=1 // pred_region
      %924 = vsyncadd [#allocation3], 0
      %s925 = sshll.u32 [#allocation2], 4
      %s926 = int_to_ptr.vmem [resolvable:$true] %s925
      %s927 = sshll.u32 %s5, 4
      %s928 = int_to_ptr.hbm [resolvable:$true] %s927
      %933 = dma.vmem_to_hbm [thread:$0]  %s926, 256, %s928, [#allocation3], 128, 128, 8
    $region25: #{transformer_encoder_layer.1} parent=1 // pred_fallthru
      _
    // Predicated region
    $region26: #{transformer_encoder_layer.1} parent=1 // pred_check
      _
    $region27: #{transformer_encoder_layer.1} parent=1 // pred_check_branch
      %935 = sbr.rel (0) target = $region29
    $region28: #{transformer_encoder_layer.1} parent=1 // pred_region
      %937 = dma.done [#allocation3], 256
    $region29: #{transformer_encoder_layer.1} parent=1 // pred_fallthru
      _
    %938 = vsyncpa [#allocation3], 1

</llo_original>
